<compile_context>
chip_gen: v5e
topology: v5e:2x2
jax: 0.10.0
libtpu: 0.0.40
codegen_flags: <defaults>
</compile_context>

<pallas_src>
import jax
import jax.numpy as jnp
from jax import lax
from jax.experimental import pallas as pl
from jax.experimental.pallas import tpu as pltpu

BN_EPS = 1e-5  # nn.BatchNorm1d default


def bn_relu_kernel(x_ref, gb_ref, o_ref):
    # x_ref: (B, C, L) — normalize each channel c over (B, L) batch stats.
    # gb_ref: (2, C, 1) — gb[0] = gamma, gb[1] = beta.
    x = x_ref[...].astype(jnp.float32)
    n = x.shape[0] * x.shape[2]
    inv_n = jnp.float32(1.0 / n)

    # Two-pass, numerically robust statistics (biased variance, as in
    # training-mode BatchNorm forward).
    mean = jnp.sum(x, axis=(0, 2), keepdims=True) * inv_n          # (1, C, 1)
    xc = x - mean
    var = jnp.sum(xc * xc, axis=(0, 2), keepdims=True) * inv_n     # (1, C, 1)

    inv_std = lax.rsqrt(var + BN_EPS)                              # (1, C, 1)

    gamma = gb_ref[0:1, :, :]                                      # (1, C, 1)
    beta = gb_ref[1:2, :, :]                                       # (1, C, 1)

    # y = (x - mean) * (gamma * inv_std) + beta, then ReLU, one fused store.
    scale = gamma * inv_std
    y = xc * scale + beta
    o_ref[...] = jnp.maximum(y, 0.0).astype(o_ref.dtype)


def layernorm_forward(x, gamma, beta):
    """x: (B, C, L) float32.  gamma, beta: (C,) float32."""
    B, C, L = x.shape
    # Single packed affine operand: one small DMA instead of two.
    gb = jnp.stack([gamma, beta], axis=0).reshape(2, C, 1).astype(jnp.float32)

    return pl.pallas_call(
        bn_relu_kernel,
        out_shape=jax.ShapeDtypeStruct((B, C, L), x.dtype),
        in_specs=[
            pl.BlockSpec(memory_space=pltpu.MemorySpace.VMEM),  # whole x
            pl.BlockSpec(memory_space=pltpu.MemorySpace.VMEM),  # packed gamma/beta
        ],
        out_specs=pl.BlockSpec(memory_space=pltpu.MemorySpace.VMEM),
    )(x, gb)


def reference_forward(x, gamma, beta):
    x32 = x.astype(jnp.float32)
    mean = jnp.mean(x32, axis=(0, 2), keepdims=True)
    var = jnp.mean((x32 - mean) ** 2, axis=(0, 2), keepdims=True)
    xhat = (x32 - mean) / jnp.sqrt(var + BN_EPS)
    y = xhat * gamma.reshape(1, -1, 1) + beta.reshape(1, -1, 1)
    return jnp.maximum(y, 0.0).astype(x.dtype)


if __name__ == "__main__":
    # Small shapes implied by the module: batch=2, max_len=8 (channel axis of
    # BatchNorm1d), d_model=32 (trailing length axis).
    B, MAX_LEN, D_MODEL = 2, 8, 32

    key = jax.random.PRNGKey(0)
    x = jax.random.normal(key, (B, MAX_LEN, D_MODEL), dtype=jnp.float32)

    # Deterministic, non-trivial affine parameters (PyTorch inits gamma=1,
    # beta=0; perturb slightly so the affine path is actually exercised).
    gamma = 1.0 + 0.01 * jnp.arange(MAX_LEN, dtype=jnp.float32)
    beta = 0.05 * jnp.arange(MAX_LEN, dtype=jnp.float32)

    out = layernorm_forward(x, gamma, beta)
    out = jax.block_until_ready(out)

    ref = reference_forward(x, gamma, beta)
    assert out.shape == (B, MAX_LEN, D_MODEL)
    assert jnp.allclose(out, ref, atol=1e-5, rtol=1e-5), "mismatch vs reference"

    print("KERNEL_OK")
</pallas_src>

<mosaic_0001>
module attributes {stable_mosaic.version = 11 : i64} {
  func.func @bn_relu_kernel(%arg0: memref<2x8x32xf32, #tpu.memory_space<vmem>>, %arg1: memref<2x8x1xf32, #tpu.memory_space<vmem>>, %arg2: memref<2x8x32xf32, #tpu.memory_space<vmem>>) attributes {dimension_semantics = [], scalar_prefetch = 0 : i64, scratch_operands = 0 : i64, tpu.core_type = #tpu.core_type<tc>} {
    %c0 = arith.constant 0 : index
    %c0_0 = arith.constant 0 : index
    %c0_1 = arith.constant 0 : index
    %0 = vector.load %arg0[%c0, %c0_0, %c0_1] : memref<2x8x32xf32, #tpu.memory_space<vmem>>, vector<2x8x32xf32>
    %cst = arith.constant dense<0.000000e+00> : vector<8xf32>
    %1 = vector.multi_reduction <add>, %0, %cst [0, 2] : vector<2x8x32xf32> to vector<8xf32>
    %2 = vector.shape_cast %1 : vector<8xf32> to vector<1x8x1xf32>
    %cst_2 = arith.constant 1.562500e-02 : f32
    %3 = vector.broadcast %cst_2 : f32 to vector<1x8x1xf32>
    %4 = arith.mulf %2, %3 : vector<1x8x1xf32>
    %5 = vector.broadcast %4 : vector<1x8x1xf32> to vector<2x8x32xf32>
    %6 = arith.subf %0, %5 : vector<2x8x32xf32>
    %7 = arith.mulf %6, %6 : vector<2x8x32xf32>
    %cst_3 = arith.constant dense<0.000000e+00> : vector<8xf32>
    %8 = vector.multi_reduction <add>, %7, %cst_3 [0, 2] : vector<2x8x32xf32> to vector<8xf32>
    %9 = vector.shape_cast %8 : vector<8xf32> to vector<1x8x1xf32>
    %cst_4 = arith.constant 1.562500e-02 : f32
    %10 = vector.broadcast %cst_4 : f32 to vector<1x8x1xf32>
    %11 = arith.mulf %9, %10 : vector<1x8x1xf32>
    %cst_5 = arith.constant 9.99999974E-6 : f32
    %12 = vector.broadcast %cst_5 : f32 to vector<1x8x1xf32>
    %13 = arith.addf %11, %12 : vector<1x8x1xf32>
    %14 = math.rsqrt %13 : vector<1x8x1xf32>
    %c0_6 = arith.constant 0 : index
    %c0_7 = arith.constant 0 : index
    %c0_8 = arith.constant 0 : index
    %15 = vector.load %arg1[%c0_6, %c0_7, %c0_8] : memref<2x8x1xf32, #tpu.memory_space<vmem>>, vector<1x8x1xf32>
    %c1 = arith.constant 1 : index
    %c0_9 = arith.constant 0 : index
    %c0_10 = arith.constant 0 : index
    %16 = vector.load %arg1[%c1, %c0_9, %c0_10] : memref<2x8x1xf32, #tpu.memory_space<vmem>>, vector<1x8x1xf32>
    %17 = arith.mulf %15, %14 : vector<1x8x1xf32>
    %18 = vector.broadcast %17 : vector<1x8x1xf32> to vector<2x8x32xf32>
    %19 = arith.mulf %6, %18 : vector<2x8x32xf32>
    %20 = vector.broadcast %16 : vector<1x8x1xf32> to vector<2x8x32xf32>
    %21 = arith.addf %19, %20 : vector<2x8x32xf32>
    %cst_11 = arith.constant 0.000000e+00 : f32
    %22 = vector.broadcast %cst_11 : f32 to vector<2x8x32xf32>
    %23 = arith.maximumf %21, %22 : vector<2x8x32xf32>
    %c0_12 = arith.constant 0 : index
    %c0_13 = arith.constant 0 : index
    %c0_14 = arith.constant 0 : index
    %24 = vector.load %arg2[%c0_12, %c0_13, %c0_14] : memref<2x8x32xf32, #tpu.memory_space<vmem>>, vector<2x8x32xf32>
    tpu.vector_store %arg2[%c0_12, %c0_13, %c0_14], %23 {strides = array<i32>} : memref<2x8x32xf32, #tpu.memory_space<vmem>>, vector<2x8x32xf32>,
    return
  }
}

</mosaic_0001>

<llo_original>
// kernel: tpu_custom_call.1
$region0: #{tpu_custom_call.1}
  #allocation0 [shape = 'u32[]', space=smem, size = 0x4, offset = 0x4, fixed_abs, tag = 'smem constant byte address 0x4 - core index']
  #allocation1 [shape = 'u32[72,128]{1,0:T(1,128)}', space=vmem, size = 0x9000, scoped, tag = 'internal scratch']
  %s0 = inlined_call_operand.vmem [shape: f32[2,8,32], index: 0, kind: input, shape index: {}]
  %s1 = inlined_call_operand.vmem [shape: f32[2,8,1], index: 1, kind: input, shape index: {}]
  %s2 = inlined_call_operand.hbm [shape: f32[2,8,32], index: 2, kind: output, shape index: {}]
  %s3 = sld [smem:[#allocation0]]
  $region18: #{tpu_custom_call.1} parent=0
    _
  %s5 = ssub.s32 1, %s3
  %s6 = scalar_select 0, %s5, %s3
  $region1: #{tpu_custom_call.1} parent=0
    #allocation2 [shape = 'u8[8192]{0}', space=vmem, size = 0x2000, scoped, tag = 'output window, operand 0, single buffered']
    #allocation3 [shape = 's32[1]{0}', space=sflag, size = 0x4, scoped, tag = 'scoped memory for tpu_custom_call.1']
    %7 = vsyncpa [#allocation3], 0
    // Predicated region
    $region2: #{tpu_custom_call.1} parent=1 // pred_check
      _
    $region3: #{tpu_custom_call.1} parent=1 // pred_check_branch
      %9 = sbr.rel (0) target = $region5
    $region4: #{tpu_custom_call.1} parent=1 // pred_region
      _
    $region5: #{tpu_custom_call.1} parent=1 // pred_fallthru
      _
    // Predicated region
    $region6: #{tpu_custom_call.1} parent=1 // pred_check
      _
    $region7: #{tpu_custom_call.1} parent=1 // pred_check_branch
      %11 = sbr.rel (0) target = $region9
    $region8: #{tpu_custom_call.1} parent=1 // pred_region
      _
    $region9: #{tpu_custom_call.1} parent=1 // pred_fallthru
      _
    %v12 = vld [vmem:[%s0] sm:$0xff]
    %v13 = vld [vmem:[%s0 + $0x8] sm:$0xff]
    %vm14 = vcmask 261120
    %v15 = vsel %vm14, %v12, 0.0
    %v16 = vsel %vm14, %v13, 0.0
    %v17 = vadd.f32 %v15, %v16
    %18 = vadd.xlane.f32.xlu0 %v17
    %v19 = vpop.xlane.xlu0 %18
    %v20 = vmul.f32 %v19, 0.015625
    %v21 = vsub.f32 %v12, %v20
    %v22 = vsub.f32 %v13, %v20
    %v23 = vmul.f32 %v21, %v21
    %v24 = vmul.f32 %v22, %v22
    %v25 = vsel %vm14, %v23, 0.0
    %v26 = vsel %vm14, %v24, 0.0
    %v27 = vadd.f32 %v25, %v26
    %28 = vadd.xlane.f32.xlu0 %v27
    %v29 = vpop.xlane.xlu0 %28
    %v30 = vmul.f32 %v29, 0.015625
    %v31 = vadd.f32 %v30, 1e-05
    %v32 = vrsqrt.pop %v31
    %v33 = vmul.f32 %v32, %v31
    %v34 = vmul.f32 %v33, %v32
    %v35 = vmul.f32 0.5, %v34
    %v36 = vsub.f32 1.5, %v35
    %v37 = vmul.f32 %v32, %v36
    %vm38 = vweird.f32 %v31
    %vm39 = vweird.f32 %v32
    %vm40 = vmor %vm38, %vm39
    %v41 = vsel %vm40, %v32, %v37
    %v42 = vld [vmem:[%s1] sm:$0xff]
    %s43 = scalar_lea.vmem %s1, 8
    %v44 = vld [vmem:[%s43] sm:$0xff]
    %v45 = vmul.f32 %v42, %v41
    %47 = vset.pattern.permute.xlu0 0
    %48 = vperm.xlu0 %47, %v45
    %v49 = vpop.permute.xlu0 %48
    %v51 = vmul.f32 %v21, %v49
    %v52 = vmul.f32 %v22, %v49
    %54 = vset.pattern.permute.xlu0 0
    %55 = vperm.xlu0 %54, %v44
    %v56 = vpop.permute.xlu0 %55
    %v58 = vadd.f32 %v51, %v56
    %v59 = vadd.f32 %v52, %v56
    %v60 = vmax.f32 %v58, 0.0
    %v61 = vmax.f32 %v59, 0.0
    %62 = vst.msk [vmem:[#allocation2] sm:$0xff] %vm14, %v60
    %63 = vst.msk [vmem:[#allocation2 + $0x8] sm:$0xff] %vm14, %v61
    // Predicated region
    $region10: #{tpu_custom_call.1} parent=1 // pred_check
      _
    $region11: #{tpu_custom_call.1} parent=1 // pred_check_branch
      %65 = sbr.rel (0) target = $region13
    $region12: #{tpu_custom_call.1} parent=1 // pred_region
      %67 = vsyncadd [#allocation3], 0
      %s68 = sshll.u32 [#allocation2], 4
      %s69 = int_to_ptr.vmem [resolvable:$true] %s68
      %s70 = sshll.u32 %s2, 4
      %s71 = int_to_ptr.hbm [resolvable:$true] %s70
      %76 = dma.vmem_to_hbm [thread:$0]  %s69, 256, %s71, [#allocation3], 128, 128, 8
    $region13: #{tpu_custom_call.1} parent=1 // pred_fallthru
      _
    // Predicated region
    $region14: #{tpu_custom_call.1} parent=1 // pred_check
      _
    $region15: #{tpu_custom_call.1} parent=1 // pred_check_branch
      %78 = sbr.rel (0) target = $region17
    $region16: #{tpu_custom_call.1} parent=1 // pred_region
      %80 = dma.done [#allocation3], 256
    $region17: #{tpu_custom_call.1} parent=1 // pred_fallthru
      _
    %81 = vsyncpa [#allocation3], 1

</llo_original>
